<compile_context>
chip_gen: v7x
topology: tpu7x:2x2x1
jax: 0.10.0
libtpu: 0.0.40
codegen_flags: <defaults>
</compile_context>

<pallas_src>
import functools

import jax
import jax.numpy as jnp
from jax.experimental import pallas as pl
from jax.experimental.pallas import tpu as pltpu

LANE = 128     # lane tile (last dim)
SUBLANE = 8    # sublane tile (second-to-last dim, f32)


def _round_up(x, m):
    return ((x + m - 1) // m) * m


def _pick_tb(B, block_b, min_grid_steps):
    """Batch tile: multiple of 8, capped at block_b, split into >= min_grid_steps blocks."""
    block_b = max(SUBLANE, (block_b // SUBLANE) * SUBLANE)     # clamp to multiple of 8
    per_step = _round_up(pl.cdiv(B, max(1, min_grid_steps)), SUBLANE)
    return max(SUBLANE, min(block_b, per_step))


def _policy_fwd_kernel(x_ref, w1_ref, b1_ref, w2_ref, b2_ref, w3_ref, b3_ref,
                       out_ref, *, a_dim, fuse_softplus):
    cdt = w1_ref.dtype   # MXU input dtype (f32 or bf16); accumulation is always f32.
    x = x_ref[...]

    # Layer 1: Linear + tanh  (bias add & tanh in f32 — safe on v5e's f32-only VPU/EUP)
    h1 = jnp.tanh(
        jnp.dot(x, w1_ref[...], preferred_element_type=jnp.float32) + b1_ref[...]
    )
    # Layer 2: Linear + tanh
    h2 = jnp.tanh(
        jnp.dot(h1.astype(cdt), w2_ref[...], preferred_element_type=jnp.float32)
        + b2_ref[...]
    )
    # Layer 3: Linear -> [tb, N_pad]
    out = (jnp.dot(h2.astype(cdt), w3_ref[...], preferred_element_type=jnp.float32)
           + b3_ref[...])

    if fuse_softplus:
        # softplus on the log_std columns (a_dim .. 2*a_dim-1) under a lane mask.
        # Note: this still runs EUP work on all lanes, so it's only used for small B
        # where an extra XLA launch in the wrapper would dominate.
        col = jax.lax.broadcasted_iota(jnp.int32, out.shape, dimension=1)
        out = jnp.where(col < a_dim, out, jnp.logaddexp(out, 0.0))

    # TODO(synk): on v5e, emitting this slab as bf16 would halve the (16x lane-amplified)
    # output write traffic if downstream tolerates it.
    out_ref[...] = out.astype(out_ref.dtype)


def init_params(key, num_inputs, num_actions, hidden_size):
    """Deterministic init mirroring nn.Linear's default U(-1/sqrt(fan_in), +1/sqrt(fan_in))."""
    ks = jax.random.split(key, 6)

    def lin(kw, kb, fan_in, fan_out):
        bound = 1.0 / jnp.sqrt(jnp.float32(fan_in))
        w = jax.random.uniform(kw, (fan_in, fan_out), jnp.float32, -bound, bound)
        b = jax.random.uniform(kb, (1, fan_out), jnp.float32, -bound, bound)
        return w, b

    w1, b1 = lin(ks[0], ks[1], num_inputs, hidden_size)
    w2, b2 = lin(ks[2], ks[3], hidden_size, hidden_size)
    w3, b3 = lin(ks[4], ks[5], hidden_size, 2 * num_actions)
    return (w1, b1, w2, b2, w3, b3)


def prepare_params(params, *, use_bf16=False):
    """Zero-pad parameters ONCE to lane tiles (outside the per-step loop).

    Only the hidden / output feature dims are padded to 128 lanes; w1 keeps its K
    input rows so the state never needs lane padding.  Zero padding is exact:
    padded hidden units get bias 0 -> tanh(0) = 0 and feed zero weight rows of the
    next layer; padded output columns are discarded by the wrapper slice.

    use_bf16=True stores the weights in bf16 (MXU-native on v6e/v7x); biases stay f32.
    """
    w1, b1, w2, b2, w3, b3 = params
    K, H = w1.shape
    N = w3.shape[1]
    Hp, Np = _round_up(H, LANE), _round_up(N, LANE)
    wdt = jnp.bfloat16 if use_bf16 else jnp.float32

    def padw(a, rows, cols):
        return jnp.pad(a, ((0, rows - a.shape[0]), (0, cols - a.shape[1]))).astype(wdt)

    def padb(a, cols):
        return jnp.pad(a, ((0, 0), (0, cols - a.shape[1]))).astype(jnp.float32)

    padded = (padw(w1, K, Hp), padb(b1, Hp),
              padw(w2, Hp, Hp), padb(b2, Hp),
              padw(w3, Hp, Np), padb(b3, Np))
    return padded, (K, H, N)


def policy_forward(state, padded_params, dims, *, block_b=1024, min_grid_steps=1,
                   softplus_in_kernel=None):
    """state: [B, num_inputs] -> (mu [B, a_dim], std [B, a_dim]).

    min_grid_steps: set to 2 on v7x for large B so the 'parallel' batch axis actually
    feeds both TensorCores; leave at 1 on v5e/v6e (single TC, biggest block wins).
    """
    w1, b1, w2, b2, w3, b3 = padded_params
    K, H, N = dims
    a_dim = N // 2
    B = state.shape[0]
    Np = w3.shape[1]
    compute_dtype = w1.dtype

    assert state.shape[1] == K, "state feature dim must match num_inputs"

    tb = _pick_tb(B, block_b, min_grid_steps)
    grid = (pl.cdiv(B, tb),)                     # tail block store is masked by Pallas

    if softplus_in_kernel is None:
        softplus_in_kernel = B <= 512            # fuse only when launch overhead dominates

    x = state.astype(compute_dtype)              # no lane pad, no batch pad

    vmem_full = pl.BlockSpec(memory_space=pltpu.MemorySpace.VMEM)

    fused = pl.pallas_call(
        functools.partial(_policy_fwd_kernel, a_dim=a_dim,
                          fuse_softplus=softplus_in_kernel),
        out_shape=jax.ShapeDtypeStruct((B, Np), jnp.float32),
        grid=grid,
        in_specs=[
            pl.BlockSpec((tb, K), lambda i: (i, 0)),   # state: pipelined over batch
            vmem_full, vmem_full,                       # w1, b1 (resident in VMEM)
            vmem_full, vmem_full,                       # w2, b2
            vmem_full, vmem_full,                       # w3, b3
        ],
        out_specs=pl.BlockSpec((tb, Np), lambda i: (i, 0)),   # lane-dense output slab
        compiler_params=pltpu.CompilerParams(
            dimension_semantics=("parallel",),          # shards batch across v7x's 2 TCs
        ),
    )(x, w1, b1, w2, b2, w3, b3)

    mu = fused[:, :a_dim]
    log_std_or_std = fused[:, a_dim:2 * a_dim]
    std = log_std_or_std if softplus_in_kernel else jax.nn.softplus(log_std_or_std)
    return mu, std


def policy_forward_ref(state, params):
    w1, b1, w2, b2, w3, b3 = params
    h1 = jnp.tanh(state @ w1 + b1)
    h2 = jnp.tanh(h1 @ w2 + b2)
    out = h2 @ w3 + b3
    a_dim = w3.shape[1] // 2
    return out[:, :a_dim], jax.nn.softplus(out[:, a_dim:])


if __name__ == "__main__":
    # Small, forward-consistent shapes.
    batch = 8
    num_inputs = 16
    num_actions = 4
    hidden_size = 32

    key = jax.random.PRNGKey(0)
    k_state, k_params, k_state2 = jax.random.split(key, 3)

    params = init_params(k_params, num_inputs, num_actions, hidden_size)

    # --- Case 1: exact f32 path, tiny batch (single block, fused softplus). ---------
    padded_f32, dims = prepare_params(params, use_bf16=False)   # pad weights once
    state = jax.random.normal(k_state, (batch, num_inputs), dtype=jnp.float32)
    mu, std = policy_forward(state, padded_f32, dims)
    mu, std = jax.block_until_ready((mu, std))

    mu_ref, std_ref = policy_forward_ref(state, params)
    assert mu.shape == (batch, num_actions) and std.shape == (batch, num_actions)
    assert jnp.allclose(mu, mu_ref, atol=1e-5, rtol=1e-5)
    assert jnp.allclose(std, std_ref, atol=1e-5, rtol=1e-5)
    assert bool(jnp.all(std > 0.0))   # softplus output must be positive

    # --- Case 2: batch not divisible by the block (multi-block grid + masked tail). --
    state2 = jax.random.normal(k_state2, (200, num_inputs), dtype=jnp.float32)
    mu2, std2 = policy_forward(state2, padded_f32, dims, block_b=64, min_grid_steps=2)
    mu2, std2 = jax.block_until_ready((mu2, std2))

    mu2_ref, std2_ref = policy_forward_ref(state2, params)
    assert mu2.shape == (200, num_actions) and std2.shape == (200, num_actions)
    assert jnp.allclose(mu2, mu2_ref, atol=1e-5, rtol=1e-5)
    assert jnp.allclose(std2, std2_ref, atol=1e-5, rtol=1e-5)

    # --- Case 3: bf16 MXU inputs (v6e/v7x fast path) + wrapper-side softplus. --------
    padded_bf16, dims_b = prepare_params(params, use_bf16=True)
    mu3, std3 = policy_forward(state2, padded_bf16, dims_b, softplus_in_kernel=False)
    mu3, std3 = jax.block_until_ready((mu3, std3))
    assert mu3.shape == (200, num_actions) and std3.shape == (200, num_actions)
    assert jnp.allclose(mu3, mu2_ref, atol=5e-2, rtol=5e-2)     # bf16 precision
    assert jnp.allclose(std3, std2_ref, atol=5e-2, rtol=5e-2)
    assert bool(jnp.all(std3 > 0.0))

    # TODO(synk): the `AF='sin'` branch (separate mu / log_std heads with sin/ReLU) is not
    # exercised by the default constructor and is not implemented here.
    print("KERNEL_OK")
</pallas_src>

<mosaic_0001>
module attributes {stable_mosaic.version = 11 : i64} {
  func.func @_policy_fwd_kernel(%arg0: i32, %arg1: memref<8x16xf32, #tpu.memory_space<vmem>>, %arg2: memref<16x128xf32, #tpu.memory_space<vmem>>, %arg3: memref<1x128xf32, #tpu.memory_space<vmem>>, %arg4: memref<128x128xf32, #tpu.memory_space<vmem>>, %arg5: memref<1x128xf32, #tpu.memory_space<vmem>>, %arg6: memref<128x128xf32, #tpu.memory_space<vmem>>, %arg7: memref<1x128xf32, #tpu.memory_space<vmem>>, %arg8: memref<8x128xf32, #tpu.memory_space<vmem>>) attributes {dimension_semantics = [#tpu.dimension_semantics<parallel>], iteration_bounds = array<i64: 1>, scalar_prefetch = 0 : i64, scratch_operands = 0 : i64, tpu.core_type = #tpu.core_type<tc>, window_params = [{transform_indices = @transform_0, window_bounds = array<i64: 8, 16>}, {pipeline_mode = #tpu.pipeline_mode<synchronous>, transform_indices = @transform_1, window_bounds = array<i64: 16, 128>}, {pipeline_mode = #tpu.pipeline_mode<synchronous>, transform_indices = @transform_2, window_bounds = array<i64: 1, 128>}, {pipeline_mode = #tpu.pipeline_mode<synchronous>, transform_indices = @transform_3, window_bounds = array<i64: 128, 128>}, {pipeline_mode = #tpu.pipeline_mode<synchronous>, transform_indices = @transform_4, window_bounds = array<i64: 1, 128>}, {pipeline_mode = #tpu.pipeline_mode<synchronous>, transform_indices = @transform_5, window_bounds = array<i64: 128, 128>}, {pipeline_mode = #tpu.pipeline_mode<synchronous>, transform_indices = @transform_6, window_bounds = array<i64: 1, 128>}, {transform_indices = @transform_7, window_bounds = array<i64: 8, 128>}]} {
    %c0 = arith.constant 0 : index
    %c0_0 = arith.constant 0 : index
    %0 = vector.load %arg1[%c0, %c0_0] : memref<8x16xf32, #tpu.memory_space<vmem>>, vector<8x16xf32>
    %c0_1 = arith.constant 0 : index
    %c0_2 = arith.constant 0 : index
    %1 = vector.load %arg2[%c0_1, %c0_2] : memref<16x128xf32, #tpu.memory_space<vmem>>, vector<16x128xf32>
    %cst = arith.constant dense<0.000000e+00> : vector<8x128xf32>
    %2 = tpu.matmul %0, %1, %cst {dimension_numbers = #tpu.dot_dimension_numbers<[1], [0], [0], [1], [0, 0, 1, 1], [], []>} : vector<8x16xf32>, vector<16x128xf32>, vector<8x128xf32> -> vector<8x128xf32>
    %c0_3 = arith.constant 0 : index
    %c0_4 = arith.constant 0 : index
    %3 = vector.load %arg3[%c0_3, %c0_4] : memref<1x128xf32, #tpu.memory_space<vmem>>, vector<1x128xf32>
    %4 = vector.broadcast %3 : vector<1x128xf32> to vector<8x128xf32>
    %5 = arith.addf %2, %4 : vector<8x128xf32>
    %6 = math.tanh %5 : vector<8x128xf32>
    %c0_5 = arith.constant 0 : index
    %c0_6 = arith.constant 0 : index
    %7 = vector.load %arg4[%c0_5, %c0_6] : memref<128x128xf32, #tpu.memory_space<vmem>>, vector<128x128xf32>
    %cst_7 = arith.constant dense<0.000000e+00> : vector<8x128xf32>
    %8 = tpu.matmul %6, %7, %cst_7 {dimension_numbers = #tpu.dot_dimension_numbers<[1], [0], [0], [1], [0, 0, 1, 1], [], []>} : vector<8x128xf32>, vector<128x128xf32>, vector<8x128xf32> -> vector<8x128xf32>
    %c0_8 = arith.constant 0 : index
    %c0_9 = arith.constant 0 : index
    %9 = vector.load %arg5[%c0_8, %c0_9] : memref<1x128xf32, #tpu.memory_space<vmem>>, vector<1x128xf32>
    %10 = vector.broadcast %9 : vector<1x128xf32> to vector<8x128xf32>
    %11 = arith.addf %8, %10 : vector<8x128xf32>
    %12 = math.tanh %11 : vector<8x128xf32>
    %c0_10 = arith.constant 0 : index
    %c0_11 = arith.constant 0 : index
    %13 = vector.load %arg6[%c0_10, %c0_11] : memref<128x128xf32, #tpu.memory_space<vmem>>, vector<128x128xf32>
    %cst_12 = arith.constant dense<0.000000e+00> : vector<8x128xf32>
    %14 = tpu.matmul %12, %13, %cst_12 {dimension_numbers = #tpu.dot_dimension_numbers<[1], [0], [0], [1], [0, 0, 1, 1], [], []>} : vector<8x128xf32>, vector<128x128xf32>, vector<8x128xf32> -> vector<8x128xf32>
    %c0_13 = arith.constant 0 : index
    %c0_14 = arith.constant 0 : index
    %15 = vector.load %arg7[%c0_13, %c0_14] : memref<1x128xf32, #tpu.memory_space<vmem>>, vector<1x128xf32>
    %16 = vector.broadcast %15 : vector<1x128xf32> to vector<8x128xf32>
    %17 = arith.addf %14, %16 : vector<8x128xf32>
    %18 = tpu.iota {dimensions = array<i32: 1>} : vector<8x128xi32>
    %c4_i32 = arith.constant 4 : i32
    %19 = vector.broadcast %c4_i32 : i32 to vector<8x128xi32>
    %20 = arith.cmpi slt, %18, %19 : vector<8x128xi32>
    %cst_15 = arith.constant 0.000000e+00 : f32
    %21 = vector.broadcast %cst_15 : f32 to vector<8x128xf32>
    %22 = arith.maximumf %17, %21 : vector<8x128xf32>
    %23 = vector.broadcast %cst_15 : f32 to vector<8x128xf32>
    %24 = arith.subf %17, %23 : vector<8x128xf32>
    %25 = arith.cmpf one, %24, %24 : vector<8x128xf32>
    %26 = vector.broadcast %cst_15 : f32 to vector<8x128xf32>
    %27 = arith.addf %17, %26 : vector<8x128xf32>
    %28 = math.absf %24 : vector<8x128xf32>
    %cst_16 = arith.constant 0.000000e+00 : f32
    %29 = vector.broadcast %cst_16 : f32 to vector<8x128xf32>
    %30 = arith.subf %29, %28 : vector<8x128xf32>
    %31 = math.exp %30 : vector<8x128xf32>
    %32 = math.log1p %31 : vector<8x128xf32>
    %33 = arith.addf %22, %32 : vector<8x128xf32>
    %34 = arith.select %25, %27, %33 : vector<8x128xi1>, vector<8x128xf32>
    %35 = arith.select %20, %17, %34 : vector<8x128xi1>, vector<8x128xf32>
    %c0_17 = arith.constant 0 : index
    %c0_18 = arith.constant 0 : index
    %36 = vector.load %arg8[%c0_17, %c0_18] : memref<8x128xf32, #tpu.memory_space<vmem>>, vector<8x128xf32>
    tpu.vector_store %arg8[%c0_17, %c0_18], %35 {strides = array<i32>} : memref<8x128xf32, #tpu.memory_space<vmem>>, vector<8x128xf32>,
    return
  }
  func.func @transform_0(%arg0: i32) -> (i32, i32) {
    %c0_i32 = arith.constant 0 : i32
    %c0_i32_0 = arith.constant 0 : i32
    return %arg0, %c0_i32 : i32, i32
  }
  func.func @transform_1(%arg0: i32) -> (i32, i32) {
    %c0_i32 = arith.constant 0 : i32
    %c0_i32_0 = arith.constant 0 : i32
    %c0_i32_1 = arith.constant 0 : i32
    return %c0_i32, %c0_i32_0 : i32, i32
  }
  func.func @transform_2(%arg0: i32) -> (i32, i32) {
    %c0_i32 = arith.constant 0 : i32
    %c0_i32_0 = arith.constant 0 : i32
    %c0_i32_1 = arith.constant 0 : i32
    return %c0_i32, %c0_i32_0 : i32, i32
  }
  func.func @transform_3(%arg0: i32) -> (i32, i32) {
    %c0_i32 = arith.constant 0 : i32
    %c0_i32_0 = arith.constant 0 : i32
    %c0_i32_1 = arith.constant 0 : i32
    return %c0_i32, %c0_i32_0 : i32, i32
  }
  func.func @transform_4(%arg0: i32) -> (i32, i32) {
    %c0_i32 = arith.constant 0 : i32
    %c0_i32_0 = arith.constant 0 : i32
    %c0_i32_1 = arith.constant 0 : i32
    return %c0_i32, %c0_i32_0 : i32, i32
  }
  func.func @transform_5(%arg0: i32) -> (i32, i32) {
    %c0_i32 = arith.constant 0 : i32
    %c0_i32_0 = arith.constant 0 : i32
    %c0_i32_1 = arith.constant 0 : i32
    return %c0_i32, %c0_i32_0 : i32, i32
  }
  func.func @transform_6(%arg0: i32) -> (i32, i32) {
    %c0_i32 = arith.constant 0 : i32
    %c0_i32_0 = arith.constant 0 : i32
    %c0_i32_1 = arith.constant 0 : i32
    return %c0_i32, %c0_i32_0 : i32, i32
  }
  func.func @transform_7(%arg0: i32) -> (i32, i32) {
    %c0_i32 = arith.constant 0 : i32
    %c0_i32_0 = arith.constant 0 : i32
    return %arg0, %c0_i32 : i32, i32
  }
}

</mosaic_0001>

<llo_original>
// kernel: tpu_custom_call.1
$region0: #{tpu_custom_call.1}
  #allocation0 [shape = 'u32[]', space=smem, size = 0x4, offset = 0x4, fixed_abs, tag = 'smem constant byte address 0x4 - core index']
  #allocation1 [shape = 'u32[144,128]{1,0:T(1,128)}', space=vmem, size = 0x12000, scoped, tag = 'internal scratch']
  %s0 = inlined_call_operand.hbm [shape: f32[8,16], index: 0, kind: input, shape index: {}]
  %s1 = inlined_call_operand.hbm [shape: f32[16,128], index: 1, kind: input, shape index: {}]
  %s2 = inlined_call_operand.vmem [shape: f32[1,128], index: 2, kind: input, shape index: {}]
  %s3 = inlined_call_operand.hbm [shape: f32[128,128], index: 3, kind: input, shape index: {}]
  %s4 = inlined_call_operand.vmem [shape: f32[1,128], index: 4, kind: input, shape index: {}]
  %s5 = inlined_call_operand.hbm [shape: f32[128,128], index: 5, kind: input, shape index: {}]
  %s6 = inlined_call_operand.vmem [shape: f32[1,128], index: 6, kind: input, shape index: {}]
  %s7 = inlined_call_operand.hbm [shape: f32[8,128], index: 7, kind: output, shape index: {}]
  %s8 = sld [smem:[#allocation0]]
  $region54: #{tpu_custom_call.1} parent=0
    _
  %s10 = ssub.s32 1, %s8
  %s11 = scalar_select 0, %s10, %s8
  $region1: #{tpu_custom_call.1} parent=0
    #allocation2 [shape = 'u8[4096]{0}', space=vmem, size = 0x1000, scoped, tag = 'input window, operand 0, single buffered']
    #allocation3 [shape = 's32[1]{0}', space=sflag, size = 0x4, scoped, tag = 'scoped memory for tpu_custom_call.1']
    #allocation4 [shape = 's32[1]{0}', space=sflag, size = 0x4, scoped, tag = 'scoped memory for tpu_custom_call.1']
    #allocation5 [shape = 'u8[8192]{0}', space=vmem, size = 0x2000, scoped, tag = 'input window, operand 1, single buffered']
    #allocation6 [shape = 's32[1]{0}', space=sflag, size = 0x4, scoped, tag = 'scoped memory for tpu_custom_call.1']
    #allocation7 [shape = 'u8[65536]{0}', space=vmem, size = 0x10000, scoped, tag = 'input window, operand 3, single buffered']
    #allocation8 [shape = 'u8[65536]{0}', space=vmem, size = 0x10000, scoped, tag = 'input window, operand 5, single buffered']
    #allocation9 [shape = 's32[1]{0}', space=sflag, size = 0x4, scoped, tag = 'scoped memory for tpu_custom_call.1']
    #allocation10 [shape = 'u8[4096]{0}', space=vmem, size = 0x1000, scoped, tag = 'output window, operand 0, single buffered']
    %12 = vsyncpa [#allocation3], 0
    %13 = vsyncpa [#allocation6], 0
    %14 = vsyncpa [#allocation9], 0
    %15 = vsyncpa [#allocation4], 0
    // Predicated region
    $region2: #{tpu_custom_call.1} parent=1 // pred_check
      _
    $region3: #{tpu_custom_call.1} parent=1 // pred_check_branch
      %17 = sbr.rel (0) target = $region5
    $region4: #{tpu_custom_call.1} parent=1 // pred_region
      %s19 = ssub.s32 128, 128
      %20 = vsyncadd [#allocation3], %s19
      %s22 = sshll.u32 [#allocation2], 4
      %s23 = int_to_ptr.vmem [resolvable:$true] %s22
      %25 = dma.hbm_to_vmem [thread:$0]  %s0, 128, %s23, [#allocation3]
    $region5: #{tpu_custom_call.1} parent=1 // pred_fallthru
      _
    // Predicated region
    $region6: #{tpu_custom_call.1} parent=1 // pred_check
      _
    $region7: #{tpu_custom_call.1} parent=1 // pred_check_branch
      %27 = sbr.rel (0) target = $region9
    $region8: #{tpu_custom_call.1} parent=1 // pred_region
      %s29 = ssub.s32 256, 256
      %30 = vsyncadd [#allocation6], %s29
      %s31 = sshll.u32 [#allocation5], 4
      %s32 = int_to_ptr.vmem [resolvable:$true] %s31
      %37 = dma.hbm_to_vmem [thread:$0]  %s1, 256, %s32, [#allocation6], 128, 128, 8
    $region9: #{tpu_custom_call.1} parent=1 // pred_fallthru
      _
    // Predicated region
    $region10: #{tpu_custom_call.1} parent=1 // pred_check
      _
    $region11: #{tpu_custom_call.1} parent=1 // pred_check_branch
      %39 = sbr.rel (0) target = $region13
    $region12: #{tpu_custom_call.1} parent=1 // pred_region
      _
    $region13: #{tpu_custom_call.1} parent=1 // pred_fallthru
      _
    // Predicated region
    $region14: #{tpu_custom_call.1} parent=1 // pred_check
      _
    $region15: #{tpu_custom_call.1} parent=1 // pred_check_branch
      %41 = sbr.rel (0) target = $region17
    $region16: #{tpu_custom_call.1} parent=1 // pred_region
      %s43 = ssub.s32 2048, 2048
      %44 = vsyncadd [#allocation6], %s43
      %s45 = sshll.u32 [#allocation7], 4
      %s46 = int_to_ptr.vmem [resolvable:$true] %s45
      %51 = dma.hbm_to_vmem [thread:$0]  %s3, 2048, %s46, [#allocation6], 128, 128, 8
    $region17: #{tpu_custom_call.1} parent=1 // pred_fallthru
      _
    // Predicated region
    $region18: #{tpu_custom_call.1} parent=1 // pred_check
      _
    $region19: #{tpu_custom_call.1} parent=1 // pred_check_branch
      %53 = sbr.rel (0) target = $region21
    $region20: #{tpu_custom_call.1} parent=1 // pred_region
      _
    $region21: #{tpu_custom_call.1} parent=1 // pred_fallthru
      _
    // Predicated region
    $region22: #{tpu_custom_call.1} parent=1 // pred_check
      _
    $region23: #{tpu_custom_call.1} parent=1 // pred_check_branch
      %55 = sbr.rel (0) target = $region25
    $region24: #{tpu_custom_call.1} parent=1 // pred_region
      %s57 = ssub.s32 2048, 2048
      %58 = vsyncadd [#allocation9], %s57
      %s59 = sshll.u32 [#allocation8], 4
      %s60 = int_to_ptr.vmem [resolvable:$true] %s59
      %65 = dma.hbm_to_vmem [thread:$0]  %s5, 2048, %s60, [#allocation9], 128, 128, 8
    $region25: #{tpu_custom_call.1} parent=1 // pred_fallthru
      _
    // Predicated region
    $region26: #{tpu_custom_call.1} parent=1 // pred_check
      _
    $region27: #{tpu_custom_call.1} parent=1 // pred_check_branch
      %67 = sbr.rel (0) target = $region29
    $region28: #{tpu_custom_call.1} parent=1 // pred_region
      _
    $region29: #{tpu_custom_call.1} parent=1 // pred_fallthru
      _
    // Predicated region
    $region30: #{tpu_custom_call.1} parent=1 // pred_check
      _
    $region31: #{tpu_custom_call.1} parent=1 // pred_check_branch
      %69 = sbr.rel (0) target = $region33
    $region32: #{tpu_custom_call.1} parent=1 // pred_region
      %70 = dma.done [#allocation3], 128
    $region33: #{tpu_custom_call.1} parent=1 // pred_fallthru
      _
    // Predicated region
    $region34: #{tpu_custom_call.1} parent=1 // pred_check
      _
    $region35: #{tpu_custom_call.1} parent=1 // pred_check_branch
      %72 = sbr.rel (0) target = $region37
    $region36: #{tpu_custom_call.1} parent=1 // pred_region
      %73 = dma.done [#allocation6], 256
    $region37: #{tpu_custom_call.1} parent=1 // pred_fallthru
      _
    // Predicated region
    $region38: #{tpu_custom_call.1} parent=1 // pred_check
      _
    $region39: #{tpu_custom_call.1} parent=1 // pred_check_branch
      %75 = sbr.rel (0) target = $region41
    $region40: #{tpu_custom_call.1} parent=1 // pred_region
      %76 = dma.done [#allocation6], 2048
    $region41: #{tpu_custom_call.1} parent=1 // pred_fallthru
      _
    // Predicated region
    $region42: #{tpu_custom_call.1} parent=1 // pred_check
      _
    $region43: #{tpu_custom_call.1} parent=1 // pred_check_branch
      %78 = sbr.rel (0) target = $region45
    $region44: #{tpu_custom_call.1} parent=1 // pred_region
      %79 = dma.done [#allocation9], 2048
    $region45: #{tpu_custom_call.1} parent=1 // pred_fallthru
      _
    %v80 = vld [vmem:[#allocation2] sm:$0xff]
    %v81 = vld [vmem:[#allocation5] sm:$0xff]
    %v82 = vld [vmem:[#allocation5 + $0x8] sm:$0xff]
    %v83 = vld [vmem:[%s2] sm:$0x1]
    %v85 = vlaneseq
    %v86 = vshrl.u32 %v85, 7
    %v87 = vsub.s32 0, %v86
    %v88 = vrot.slane %v83, %v87
    %vm90 = vcmask 130048
    %v92 = vsel %vm90, %v80, 0
    %94 = vmatprep.subr.mxu0 0.0
    %95 = vmatpush1.msra.mxu0 %v81
    %96 = vmatprep.subr.mxu0 0.0
    %97 = vmatpush1.msra.mxu0 %v82
    %98 = vmatprep.subr.mxu0 0.0
    %99 = vmatpush1.msra.mxu0 0.0
    %100 = vmatprep.subr.mxu0 0.0
    %101 = vmatpush1.msra.mxu0 0.0
    %102 = vmatprep.subr.mxu0 0.0
    %103 = vmatpush1.msra.mxu0 0.0
    %104 = vmatprep.subr.mxu0 0.0
    %105 = vmatpush1.msra.mxu0 0.0
    %106 = vmatprep.subr.mxu0 0.0
    %107 = vmatpush1.msra.mxu0 0.0
    %108 = vmatprep.subr.mxu0 0.0
    %109 = vmatpush1.msra.mxu0 0.0
    %110 = vmatprep.subr.mxu0 0.0
    %111 = vmatpush1.msra.mxu0 0.0
    %112 = vmatprep.subr.mxu0 0.0
    %113 = vmatpush1.msra.mxu0 0.0
    %114 = vmatprep.subr.mxu0 0.0
    %115 = vmatpush1.msra.mxu0 0.0
    %116 = vmatprep.subr.mxu0 0.0
    %117 = vmatpush1.msra.mxu0 0.0
    %118 = vmatprep.subr.mxu0 0.0
    %119 = vmatpush1.msra.mxu0 0.0
    %120 = vmatprep.subr.mxu0 0.0
    %121 = vmatpush1.msra.mxu0 0.0
    %122 = vmatprep.subr.mxu0 0.0
    %123 = vmatpush1.msra.mxu0 0.0
    %124 = vmatprep.subr.mxu0 0.0
    %125 = vmatpush1.msra.mxu0 0.0
    %126 = vmatprep.subr.mxu0 0.0
    %127 = vmatpush1.msra.mxu0 0.0
    %128 = vmatprep.subr.mxu0 0.0
    %129 = vmatpush1.msra.mxu0 0.0
    %130 = vmatprep.subr.mxu0 0.0
    %131 = vmatpush1.msra.mxu0 0.0
    %132 = vmatprep.subr.mxu0 0.0
    %133 = vmatpush1.msra.mxu0 0.0
    %134 = vmatprep.subr.mxu0 0.0
    %135 = vmatpush1.msra.mxu0 0.0
    %136 = vmatprep.subr.mxu0 0.0
    %137 = vmatpush1.msra.mxu0 0.0
    %138 = vmatprep.subr.mxu0 0.0
    %139 = vmatpush1.msra.mxu0 0.0
    %140 = vmatprep.subr.mxu0 0.0
    %141 = vmatpush1.msra.mxu0 0.0
    %142 = vmatprep.subr.mxu0 0.0
    %143 = vmatpush1.msra.mxu0 0.0
    %144 = vmatprep.subr.mxu0 0.0
    %145 = vmatpush1.msra.mxu0 0.0
    %146 = vmatprep.subr.mxu0 0.0
    %147 = vmatpush1.msra.mxu0 0.0
    %148 = vmatprep.subr.mxu0 0.0
    %149 = vmatpush1.msra.mxu0 0.0
    %150 = vmatprep.subr.mxu0 0.0
    %151 = vmatpush1.msra.mxu0 0.0
    %152 = vmatprep.subr.mxu0 0.0
    %153 = vmatpush1.msra.mxu0 0.0
    %154 = vmatprep.subr.mxu0 0.0
    %155 = vmatpush1.msra.mxu0 0.0
    %156 = vmatprep.subr.mxu0 0.0
    %157 = vmatpush1.msra.mxu0 0.0
    %158 = vmatprep.mubr.f32.mxu0 0.0
    %159 = vmatmul.mubr.f32.gmra.mrb[0].mxu0 %v92
    %v160 = vpop.f32.mrb[0].mxu0
    %v161 = vadd.f32 %v88, %v160
    %v162 = vpop.f32.mrb[0].mxu0
    %163 = vdwg.mxu0
    %v164 = vtanh.pop %v161
    %v165 = vld [vmem:[#allocation7] sm:$0xff]
    %v166 = vld [vmem:[#allocation7 + $0x8] sm:$0xff]
    %v167 = vld [vmem:[#allocation7 + $0x10] sm:$0xff]
    %v168 = vld [vmem:[#allocation7 + $0x18] sm:$0xff]
    %v169 = vld [vmem:[#allocation7 + $0x20] sm:$0xff]
    %v170 = vld [vmem:[#allocation7 + $0x28] sm:$0xff]
    %v171 = vld [vmem:[#allocation7 + $0x30] sm:$0xff]
    %v172 = vld [vmem:[#allocation7 + $0x38] sm:$0xff]
    %v173 = vld [vmem:[#allocation7 + $0x40] sm:$0xff]
    %v174 = vld [vmem:[#allocation7 + $0x48] sm:$0xff]
    %v175 = vld [vmem:[#allocation7 + $0x50] sm:$0xff]
    %v176 = vld [vmem:[#allocation7 + $0x58] sm:$0xff]
    %v177 = vld [vmem:[#allocation7 + $0x60] sm:$0xff]
    %v178 = vld [vmem:[#allocation7 + $0x68] sm:$0xff]
    %v179 = vld [vmem:[#allocation7 + $0x70] sm:$0xff]
    %v180 = vld [vmem:[#allocation7 + $0x78] sm:$0xff]
    %v181 = vld [vmem:[%s4] sm:$0x1]
    %v183 = vlaneseq
    %v184 = vshrl.u32 %v183, 7
    %v185 = vsub.s32 0, %v184
    %v186 = vrot.slane %v181, %v185
    %188 = vmatprep.subr.mxu0 0.0
    %189 = vmatpush1.msra.mxu0 %v165
    %190 = vmatprep.subr.mxu0 0.0
    %191 = vmatpush1.msra.mxu0 %v166
    %192 = vmatprep.subr.mxu0 0.0
    %193 = vmatpush1.msra.mxu0 %v167
    %194 = vmatprep.subr.mxu0 0.0
    %195 = vmatpush1.msra.mxu0 %v168
    %196 = vmatprep.subr.mxu0 0.0
    %197 = vmatpush1.msra.mxu0 %v169
    %198 = vmatprep.subr.mxu0 0.0
    %199 = vmatpush1.msra.mxu0 %v170
    %200 = vmatprep.subr.mxu0 0.0
    %201 = vmatpush1.msra.mxu0 %v171
    %202 = vmatprep.subr.mxu0 0.0
    %203 = vmatpush1.msra.mxu0 %v172
    %204 = vmatprep.subr.mxu0 0.0
    %205 = vmatpush1.msra.mxu0 %v173
    %206 = vmatprep.subr.mxu0 0.0
    %207 = vmatpush1.msra.mxu0 %v174
    %208 = vmatprep.subr.mxu0 0.0
    %209 = vmatpush1.msra.mxu0 %v175
    %210 = vmatprep.subr.mxu0 0.0
    %211 = vmatpush1.msra.mxu0 %v176
    %212 = vmatprep.subr.mxu0 0.0
    %213 = vmatpush1.msra.mxu0 %v177
    %214 = vmatprep.subr.mxu0 0.0
    %215 = vmatpush1.msra.mxu0 %v178
    %216 = vmatprep.subr.mxu0 0.0
    %217 = vmatpush1.msra.mxu0 %v179
    %218 = vmatprep.subr.mxu0 0.0
    %219 = vmatpush1.msra.mxu0 %v180
    %220 = vmatprep.subr.mxu0 0.0
    %221 = vmatpush1.msra.mxu0 0.0
    %222 = vmatprep.subr.mxu0 0.0
    %223 = vmatpush1.msra.mxu0 0.0
    %224 = vmatprep.subr.mxu0 0.0
    %225 = vmatpush1.msra.mxu0 0.0
    %226 = vmatprep.subr.mxu0 0.0
    %227 = vmatpush1.msra.mxu0 0.0
    %228 = vmatprep.subr.mxu0 0.0
    %229 = vmatpush1.msra.mxu0 0.0
    %230 = vmatprep.subr.mxu0 0.0
    %231 = vmatpush1.msra.mxu0 0.0
    %232 = vmatprep.subr.mxu0 0.0
    %233 = vmatpush1.msra.mxu0 0.0
    %234 = vmatprep.subr.mxu0 0.0
    %235 = vmatpush1.msra.mxu0 0.0
    %236 = vmatprep.subr.mxu0 0.0
    %237 = vmatpush1.msra.mxu0 0.0
    %238 = vmatprep.subr.mxu0 0.0
    %239 = vmatpush1.msra.mxu0 0.0
    %240 = vmatprep.subr.mxu0 0.0
    %241 = vmatpush1.msra.mxu0 0.0
    %242 = vmatprep.subr.mxu0 0.0
    %243 = vmatpush1.msra.mxu0 0.0
    %244 = vmatprep.subr.mxu0 0.0
    %245 = vmatpush1.msra.mxu0 0.0
    %246 = vmatprep.subr.mxu0 0.0
    %247 = vmatpush1.msra.mxu0 0.0
    %248 = vmatprep.subr.mxu0 0.0
    %249 = vmatpush1.msra.mxu0 0.0
    %250 = vmatprep.subr.mxu0 0.0
    %251 = vmatpush1.msra.mxu0 0.0
    %252 = vmatprep.mubr.f32.mxu0 0.0
    %253 = vmatmul.mubr.f32.gmra.mrb[0].mxu0 %v164
    %v254 = vpop.f32.mrb[0].mxu0
    %v255 = vadd.f32 %v186, %v254
    %v256 = vpop.f32.mrb[0].mxu0
    %257 = vdwg.mxu0
    %v258 = vtanh.pop %v255
    %v259 = vld [vmem:[#allocation8] sm:$0xff]
    %v260 = vld [vmem:[#allocation8 + $0x8] sm:$0xff]
    %v261 = vld [vmem:[#allocation8 + $0x10] sm:$0xff]
    %v262 = vld [vmem:[#allocation8 + $0x18] sm:$0xff]
    %v263 = vld [vmem:[#allocation8 + $0x20] sm:$0xff]
    %v264 = vld [vmem:[#allocation8 + $0x28] sm:$0xff]
    %v265 = vld [vmem:[#allocation8 + $0x30] sm:$0xff]
    %v266 = vld [vmem:[#allocation8 + $0x38] sm:$0xff]
    %v267 = vld [vmem:[#allocation8 + $0x40] sm:$0xff]
    %v268 = vld [vmem:[#allocation8 + $0x48] sm:$0xff]
    %v269 = vld [vmem:[#allocation8 + $0x50] sm:$0xff]
    %v270 = vld [vmem:[#allocation8 + $0x58] sm:$0xff]
    %v271 = vld [vmem:[#allocation8 + $0x60] sm:$0xff]
    %v272 = vld [vmem:[#allocation8 + $0x68] sm:$0xff]
    %v273 = vld [vmem:[#allocation8 + $0x70] sm:$0xff]
    %v274 = vld [vmem:[#allocation8 + $0x78] sm:$0xff]
    %v275 = vld [vmem:[%s6] sm:$0x1]
    %v277 = vlaneseq
    %v278 = vshrl.u32 %v277, 7
    %v279 = vsub.s32 0, %v278
    %v280 = vrot.slane %v275, %v279
    %282 = vmatprep.subr.mxu0 0.0
    %283 = vmatpush1.msra.mxu0 %v259
    %284 = vmatprep.subr.mxu0 0.0
    %285 = vmatpush1.msra.mxu0 %v260
    %286 = vmatprep.subr.mxu0 0.0
    %287 = vmatpush1.msra.mxu0 %v261
    %288 = vmatprep.subr.mxu0 0.0
    %289 = vmatpush1.msra.mxu0 %v262
    %290 = vmatprep.subr.mxu0 0.0
    %291 = vmatpush1.msra.mxu0 %v263
    %292 = vmatprep.subr.mxu0 0.0
    %293 = vmatpush1.msra.mxu0 %v264
    %294 = vmatprep.subr.mxu0 0.0
    %295 = vmatpush1.msra.mxu0 %v265
    %296 = vmatprep.subr.mxu0 0.0
    %297 = vmatpush1.msra.mxu0 %v266
    %298 = vmatprep.subr.mxu0 0.0
    %299 = vmatpush1.msra.mxu0 %v267
    %300 = vmatprep.subr.mxu0 0.0
    %301 = vmatpush1.msra.mxu0 %v268
    %302 = vmatprep.subr.mxu0 0.0
    %303 = vmatpush1.msra.mxu0 %v269
    %304 = vmatprep.subr.mxu0 0.0
    %305 = vmatpush1.msra.mxu0 %v270
    %306 = vmatprep.subr.mxu0 0.0
    %307 = vmatpush1.msra.mxu0 %v271
    %308 = vmatprep.subr.mxu0 0.0
    %309 = vmatpush1.msra.mxu0 %v272
    %310 = vmatprep.subr.mxu0 0.0
    %311 = vmatpush1.msra.mxu0 %v273
    %312 = vmatprep.subr.mxu0 0.0
    %313 = vmatpush1.msra.mxu0 %v274
    %314 = vmatprep.subr.mxu0 0.0
    %315 = vmatpush1.msra.mxu0 0.0
    %316 = vmatprep.subr.mxu0 0.0
    %317 = vmatpush1.msra.mxu0 0.0
    %318 = vmatprep.subr.mxu0 0.0
    %319 = vmatpush1.msra.mxu0 0.0
    %320 = vmatprep.subr.mxu0 0.0
    %321 = vmatpush1.msra.mxu0 0.0
    %322 = vmatprep.subr.mxu0 0.0
    %323 = vmatpush1.msra.mxu0 0.0
    %324 = vmatprep.subr.mxu0 0.0
    %325 = vmatpush1.msra.mxu0 0.0
    %326 = vmatprep.subr.mxu0 0.0
    %327 = vmatpush1.msra.mxu0 0.0
    %328 = vmatprep.subr.mxu0 0.0
    %329 = vmatpush1.msra.mxu0 0.0
    %330 = vmatprep.subr.mxu0 0.0
    %331 = vmatpush1.msra.mxu0 0.0
    %332 = vmatprep.subr.mxu0 0.0
    %333 = vmatpush1.msra.mxu0 0.0
    %334 = vmatprep.subr.mxu0 0.0
    %335 = vmatpush1.msra.mxu0 0.0
    %336 = vmatprep.subr.mxu0 0.0
    %337 = vmatpush1.msra.mxu0 0.0
    %338 = vmatprep.subr.mxu0 0.0
    %339 = vmatpush1.msra.mxu0 0.0
    %340 = vmatprep.subr.mxu0 0.0
    %341 = vmatpush1.msra.mxu0 0.0
    %342 = vmatprep.subr.mxu0 0.0
    %343 = vmatpush1.msra.mxu0 0.0
    %344 = vmatprep.subr.mxu0 0.0
    %345 = vmatpush1.msra.mxu0 0.0
    %346 = vmatprep.mubr.f32.mxu0 0.0
    %347 = vmatmul.mubr.f32.gmra.mrb[0].mxu0 %v258
    %v348 = vpop.f32.mrb[0].mxu0
    %v349 = vadd.f32 %v280, %v348
    %v350 = vpop.f32.mrb[0].mxu0
    %351 = vdwg.mxu0
    %v352 = vlaneseq
    %v353 = vand.u32 %v352, 127
    %vm354 = vcmp.lt.s32.totalorder %v353, 4
    %v355 = vmax.f32 %v349, 0.0
    %vm356 = vcmp.ne.f32.partialorder %v349, %v349
    %v357 = vadd.f32 %v349, 0.0
    %v358 = vand.u32 2147483647, %v349
    %v359 = vsub.f32 0.0, %v358
    %v360 = vmul.f32 %v359, 1.442695
    %v361 = vpow.pop %v360
    %v362 = vadd.f32 %v361, 1.0
    %v363 = vlog2.pop %v362
    %v364 = vmul.f32 %v363, 0.6931472
    %v365 = vmul.f32 -0.5, %v361
    %v366 = vadd.f32 %v365, 1.0
    %v367 = vmul.f32 %v366, %v361
    %v368 = vand.u32 2147483647, %v361
    %vm369 = vcmp.lt.f32.partialorder %v368, 0.0004427343
    %v370 = vsel %vm369, %v367, %v364
    %v371 = vadd.f32 %v355, %v370
    %v372 = vsel %vm356, %v357, %v371
    %v373 = vsel %vm354, %v349, %v372
    %374 = vst [vmem:[#allocation10] sm:$0xff] %v373
    // Predicated region
    $region46: #{tpu_custom_call.1} parent=1 // pred_check
      _
    $region47: #{tpu_custom_call.1} parent=1 // pred_check_branch
      %376 = sbr.rel (0) target = $region49
    $region48: #{tpu_custom_call.1} parent=1 // pred_region
      %s378 = ssub.s32 128, 128
      %379 = vsyncadd [#allocation4], %s378
      %s381 = sshll.u32 [#allocation10], 4
      %s382 = int_to_ptr.vmem [resolvable:$true] %s381
      %384 = dma.vmem_to_hbm [thread:$0]  %s382, 128, %s7, [#allocation4]
    $region49: #{tpu_custom_call.1} parent=1 // pred_fallthru
      _
    // Predicated region
    $region50: #{tpu_custom_call.1} parent=1 // pred_check
      _
    $region51: #{tpu_custom_call.1} parent=1 // pred_check_branch
      %386 = sbr.rel (0) target = $region53
    $region52: #{tpu_custom_call.1} parent=1 // pred_region
      %387 = dma.done [#allocation4], 128
    $region53: #{tpu_custom_call.1} parent=1 // pred_fallthru
      _
    %388 = vsyncpa [#allocation3], 1
    %389 = vsyncpa [#allocation6], 1
    %390 = vsyncpa [#allocation9], 1
    %391 = vsyncpa [#allocation4], 1

</llo_original>
